<compile_context>
chip_gen: v7x
topology: tpu7x:2x2x1
jax: 0.10.0
libtpu: 0.0.40
codegen_flags: <defaults>
</compile_context>

<pallas_src>
import numpy as np
import jax
import jax.numpy as jnp
from jax.experimental import pallas as pl
from jax.experimental.pallas import tpu as pltpu

FOCAL_ALPHA = 0.25
FOCAL_GAMMA = 2.0
LLOSS_GAU_MASK = True      # opt.lloss_gau_mask
LLOSS_BETA = 1.0           # opt.lloss_beta
GAUSSIAN_SIGMA = 2.0
ROW_TILE = 256             # flattened (batch*query) rows per grid step

COUNTER_CLASS_RATE = np.array([
    0.0, 0.0, 0.193425917, 0.412129084, 0.188929963, 0.0781296833,
    0.0509541413, 0.0312718553, 0.018483365, 0.0083924468, 0.00659406534,
    0.00449595364, 0.00219802178, 0.00179838146, 0.000599460486,
    0.000499550405, 0.000499550405, 0.000199820162, 0.000299730243,
    0.000399640324, 0.000299730243, 0.0, 0.000199820162, 0.0, 0.0, 0.0,
    9.99100809e-05, 9.99100809e-05], dtype=np.float32)


def _round_up(x, m):
    return (x + m - 1) // m * m


# ----------------------------------------------------------------------------
# Fused kernel: focal loss + counter loss + cardinality indicator
# ----------------------------------------------------------------------------
def _make_fused_kernel(rows_valid, C, B, M, tr, num_tiles,
                       alpha, gamma, gau_mask, beta):
    inv_two_sigma2 = 1.0 / (2.0 * GAUSSIAN_SIGMA ** 2)

    def kernel(nb_ref, x_ref, tc_ref, pc_ref, ct_ref, w_ref,
               ce_ref, cnt_ref, card_ref, acc_ref):
        i = pl.program_id(0)

        # ----- sigmoid focal loss on this (tr, C) row tile -----
        x = x_ref[...].astype(jnp.float32)                       # (tr, C) logits
        col = jax.lax.broadcasted_iota(jnp.int32, (tr, C), 1)
        t = (col == tc_ref[...]).astype(jnp.float32)             # in-kernel one-hot

        # one exp per element; derive BCE log-term AND sigmoid from it
        e = jnp.exp(-jnp.abs(x))
        bce = jnp.maximum(x, 0.0) - x * t + jnp.log1p(e)
        inv = pl.reciprocal(1.0 + e, approx=True)
        prob = jnp.where(x >= 0.0, inv, e * inv)                 # == sigmoid(x)
        p_t = prob * t + (1.0 - prob) * (1.0 - t)
        u = 1.0 - p_t
        mod = u * u if gamma == 2.0 else u ** gamma              # no float pow
        alpha_t = alpha * t + (1.0 - alpha) * (1.0 - t)
        loss = alpha_t * bce * mod

        row = jax.lax.broadcasted_iota(jnp.int32, (tr, 1), 0) + i * tr
        row_valid = row < rows_valid                             # mask pad rows
        loss = jnp.where(row_valid, loss, 0.0)

        @pl.when(i == 0)
        def _():
            acc_ref[...] = jnp.zeros_like(acc_ref)
        acc_ref[...] += jnp.sum(loss)                            # sum == mean(1).sum()*Q

        # ----- cardinality indicator: argmax(row) != C-1 (no second HBM pass) -----
        rest = jnp.where(col < C - 1, x, -jnp.inf)
        m_rest = jnp.max(rest, axis=1, keepdims=True)            # (tr, 1)
        x_last = jnp.sum(jnp.where(col == C - 1, x, 0.0), axis=1, keepdims=True)
        ind = (m_rest >= x_last).astype(jnp.float32)
        card_ref[...] = jnp.where(row_valid, ind, 0.0)

        # ----- finalize: loss_ce scalar + counter loss (once, last step) -----
        @pl.when(i == num_tiles - 1)
        def _():
            # mean(1).sum()/num_boxes * Q  ==  sum(loss)/num_boxes
            ce_ref[...] = acc_ref[...] / nb_ref[0]

            pc = pc_ref[...].astype(jnp.float32)                 # (B, M)
            cbin = jax.lax.broadcasted_iota(jnp.int32, (B, M), 1)
            ct = ct_ref[...]                                     # (B, 1) int32
            tgt = (cbin == ct).astype(jnp.float32)               # counter one-hot
            e2 = jnp.exp(-jnp.abs(pc))
            bce2 = jnp.maximum(pc, 0.0) - pc * tgt + jnp.log1p(e2)
            bce2 = bce2 * (1.0 - w_ref[...])                     # BCE weight = 1 - rate
            if gau_mask:
                d = ct.astype(jnp.float32) - cbin.astype(jnp.float32)
                gmask = jnp.exp(-(d ** 2) * inv_two_sigma2)
                if beta == 1.0:
                    coef = tgt + (1.0 - gmask) * (1.0 - tgt)     # beta==1: no pow
                else:
                    coef = tgt + (1.0 - gmask) ** beta * (1.0 - tgt)
            else:
                coef = jnp.ones_like(tgt)
            cnt = bce2 * coef
            cnt_ref[...] = jnp.reshape(jnp.mean(cnt), (1, 1))    # mean(1).mean()

    return kernel


def fused_losses(pred_logits, target_classes, pred_count, counter_target, weight,
                 num_boxes, alpha=FOCAL_ALPHA, gamma=FOCAL_GAMMA,
                 gau_mask=LLOSS_GAU_MASK, beta=LLOSS_BETA):
    """Returns (loss_ce, loss_counter, card_pred[B]) from a single pallas_call."""
    B, Q, C = pred_logits.shape
    M = pred_count.shape[1]
    rows = B * Q
    rows_pad = _round_up(rows, 8)
    tr = ROW_TILE if rows_pad >= ROW_TILE else rows_pad
    num_tiles = (rows_pad + tr - 1) // tr

    x2 = pred_logits.reshape(rows, C)
    tc2 = target_classes.reshape(rows, 1).astype(jnp.int32)
    if rows_pad != rows:
        x2 = jnp.pad(x2, ((0, rows_pad - rows), (0, 0)))
        tc2 = jnp.pad(tc2, ((0, rows_pad - rows), (0, 0)), constant_values=C)

    nb = jnp.asarray(num_boxes, jnp.float32).reshape((1,))
    ct2 = counter_target.reshape(B, 1).astype(jnp.int32)
    w2 = weight.reshape(1, M).astype(jnp.float32)

    kernel = _make_fused_kernel(rows, C, B, M, tr, num_tiles,
                                alpha, gamma, gau_mask, beta)

    cost = pl.CostEstimate(
        flops=int(rows_pad * C * 20 + B * M * 20),
        transcendentals=int(rows_pad * C * 3 + B * M * 2),
        bytes_accessed=int(x2.size * 4 + tc2.size * 4 + rows_pad * 4 + B * M * 12),
    )

    loss_ce, loss_counter, card = pl.pallas_call(
        kernel,
        out_shape=(
            jax.ShapeDtypeStruct((1, 1), jnp.float32),            # loss_ce
            jax.ShapeDtypeStruct((1, 1), jnp.float32),            # loss_counter
            jax.ShapeDtypeStruct((rows_pad, 1), jnp.float32),     # per-query indicator
        ),
        grid=(num_tiles,),
        in_specs=[
            pl.BlockSpec(memory_space=pltpu.MemorySpace.SMEM),    # num_boxes scalar
            pl.BlockSpec((tr, C), lambda i: (i, 0)),              # logits rows
            pl.BlockSpec((tr, 1), lambda i: (i, 0)),              # target class ids
            pl.BlockSpec((B, M), lambda i: (0, 0)),               # pred_count
            pl.BlockSpec((B, 1), lambda i: (0, 0)),               # counter target ids
            pl.BlockSpec((1, M), lambda i: (0, 0)),               # class-rate weight
        ],
        out_specs=(
            pl.BlockSpec((1, 1), lambda i: (0, 0)),
            pl.BlockSpec((1, 1), lambda i: (0, 0)),
            pl.BlockSpec((tr, 1), lambda i: (i, 0)),
        ),
        scratch_shapes=[pltpu.VMEM((1, 1), jnp.float32)],         # focal accumulator
        compiler_params=pltpu.CompilerParams(
            dimension_semantics=("arbitrary",)),                  # reduction axis
        cost_estimate=cost,
    )(nb, x2, tc2, pred_count, ct2, w2)

    card_pred = jnp.sum(card[:rows, 0].reshape(B, Q), axis=1)
    return loss_ce[0, 0], loss_counter[0, 0], card_pred


# ----------------------------------------------------------------------------
# AlignCriterion.forward equivalent (losses = ['labels', 'cardinality'])
# ----------------------------------------------------------------------------
def align_criterion_forward(outputs, targets, indices, num_classes, world_size=1):
    # TODO(synk): the DTW matcher (self.matcher) has no clean Pallas equivalent;
    # `indices` are supplied precomputed, exactly as the module consumes them.
    pred_logits = outputs['pred_logits']      # (B, Q, C)
    pred_count = outputs['pred_count']        # (B, M)
    B, Q, C = pred_logits.shape
    M = pred_count.shape[1]
    max_length = M - 1

    # ---- glue: _get_src_permutation_idx + label scatter (int ids only) ----
    batch_idx = jnp.concatenate(
        [jnp.full_like(src, i) for i, (src, _) in enumerate(indices)])
    src_idx = jnp.concatenate([src for src, _ in indices])
    target_classes_o = jnp.concatenate(
        [t['labels'][J] for t, (_, J) in zip(targets, indices)])
    target_classes = jnp.full((B, Q), num_classes, dtype=jnp.int32)
    target_classes = target_classes.at[batch_idx, src_idx].set(
        target_classes_o.astype(jnp.int32))

    num_boxes = sum(int(t['labels'].shape[0]) for t in targets)
    # TODO(synk): distributed all_reduce of num_boxes across workers not modeled here.
    num_boxes = max(float(num_boxes) / float(world_size), 1.0)

    counter_target = jnp.array(
        [min(int(t['boxes'].shape[0]), max_length) for t in targets], jnp.int32)
    weight = jnp.asarray(COUNTER_CLASS_RATE[:M])

    loss_ce, loss_counter, card_pred = fused_losses(
        pred_logits, target_classes, pred_count, counter_target, weight, num_boxes)

    tgt_lengths = jnp.array([t['labels'].shape[0] for t in targets], jnp.float32)
    losses = {
        'loss_ce': loss_ce,
        'loss_counter': loss_counter,
        # cardinality error (logging-only, @torch.no_grad in reference)
        'cardinality_error': jnp.mean(jnp.abs(card_pred - tgt_lengths)),
    }
    # TODO(synk): loss_boxes ('boxes') needs box_ops (box_iou / giou), not implemented.
    return losses, indices


if __name__ == "__main__":
    key = jax.random.PRNGKey(0)
    B, Q, C = 2, 8, 32          # batch, queries, num_classes
    M = 11                      # pred_count bins (max_length = 10)

    k1, k2 = jax.random.split(key)
    pred_logits = jax.random.normal(k1, (B, Q, C), jnp.float32)
    pred_count = jax.random.normal(k2, (B, M), jnp.float32)

    # Synthetic targets + matcher output (one (src, tgt) index pair per batch item).
    targets = [
        {"labels": jnp.array([3, 5], jnp.int32),
         "boxes": jnp.zeros((2, 2), jnp.float32)},
        {"labels": jnp.array([1, 7, 2], jnp.int32),
         "boxes": jnp.zeros((3, 2), jnp.float32)},
    ]
    indices = [
        (jnp.array([0, 4], jnp.int32), jnp.array([0, 1], jnp.int32)),
        (jnp.array([2, 5, 6], jnp.int32), jnp.array([0, 1, 2], jnp.int32)),
    ]

    outputs = {"pred_logits": pred_logits, "pred_count": pred_count}
    losses, last_indices = align_criterion_forward(outputs, targets, indices, C)
    jax.block_until_ready(losses)
    assert all(bool(jnp.isfinite(v)) for v in losses.values())
    print("KERNEL_OK")
</pallas_src>

<mosaic_0001>
module attributes {stable_mosaic.version = 11 : i64} {
  func.func @kernel(%arg0: i32, %arg1: memref<1xf32, #tpu.memory_space<smem>>, %arg2: memref<16x32xf32, #tpu.memory_space<vmem>>, %arg3: memref<16x1xi32, #tpu.memory_space<vmem>>, %arg4: memref<2x11xf32, #tpu.memory_space<vmem>>, %arg5: memref<2x1xi32, #tpu.memory_space<vmem>>, %arg6: memref<1x11xf32, #tpu.memory_space<vmem>>, %arg7: memref<1x1xf32, #tpu.memory_space<vmem>>, %arg8: memref<1x1xf32, #tpu.memory_space<vmem>>, %arg9: memref<16x1xf32, #tpu.memory_space<vmem>>, %arg10: memref<1x1xf32, #tpu.memory_space<vmem>>) attributes {dimension_semantics = [#tpu.dimension_semantics<arbitrary>], iteration_bounds = array<i64: 1>, scalar_prefetch = 0 : i64, scratch_operands = 1 : i64, tpu.core_type = #tpu.core_type<tc>, window_params = [{transform_indices = @transform_0, window_bounds = array<i64: 1>}, {transform_indices = @transform_1, window_bounds = array<i64: 16, 32>}, {transform_indices = @transform_2, window_bounds = array<i64: 16, 1>}, {pipeline_mode = #tpu.pipeline_mode<synchronous>, transform_indices = @transform_3, window_bounds = array<i64: 2, 11>}, {pipeline_mode = #tpu.pipeline_mode<synchronous>, transform_indices = @transform_4, window_bounds = array<i64: 2, 1>}, {pipeline_mode = #tpu.pipeline_mode<synchronous>, transform_indices = @transform_5, window_bounds = array<i64: 1, 11>}, {pipeline_mode = #tpu.pipeline_mode<synchronous>, transform_indices = @transform_6, window_bounds = array<i64: 1, 1>}, {pipeline_mode = #tpu.pipeline_mode<synchronous>, transform_indices = @transform_7, window_bounds = array<i64: 1, 1>}, {transform_indices = @transform_8, window_bounds = array<i64: 16, 1>}]} {
    %c0 = arith.constant 0 : index
    %c0_0 = arith.constant 0 : index
    %0 = vector.load %arg2[%c0, %c0_0] : memref<16x32xf32, #tpu.memory_space<vmem>>, vector<16x32xf32>
    %1 = tpu.iota {dimensions = array<i32: 1>} : vector<16x32xi32>
    %c0_1 = arith.constant 0 : index
    %c0_2 = arith.constant 0 : index
    %2 = vector.load %arg3[%c0_1, %c0_2] : memref<16x1xi32, #tpu.memory_space<vmem>>, vector<16x1xi32>
    %3 = vector.broadcast %2 : vector<16x1xi32> to vector<16x32xi32>
    %4 = arith.cmpi eq, %1, %3 : vector<16x32xi32>
    %5 = arith.extui %4 : vector<16x32xi1> to vector<16x32xi32>
    %6 = arith.sitofp %5 : vector<16x32xi32> to vector<16x32xf32>
    %7 = math.absf %0 : vector<16x32xf32>
    %cst = arith.constant 0.000000e+00 : f32
    %8 = vector.broadcast %cst : f32 to vector<16x32xf32>
    %9 = arith.subf %8, %7 : vector<16x32xf32>
    %10 = math.exp %9 : vector<16x32xf32>
    %cst_3 = arith.constant 0.000000e+00 : f32
    %11 = vector.broadcast %cst_3 : f32 to vector<16x32xf32>
    %12 = arith.maximumf %0, %11 : vector<16x32xf32>
    %13 = arith.mulf %0, %6 : vector<16x32xf32>
    %14 = arith.subf %12, %13 : vector<16x32xf32>
    %15 = math.log1p %10 : vector<16x32xf32>
    %16 = arith.addf %14, %15 : vector<16x32xf32>
    %cst_4 = arith.constant 1.000000e+00 : f32
    %17 = vector.broadcast %cst_4 : f32 to vector<16x32xf32>
    %18 = arith.addf %17, %10 : vector<16x32xf32>
    %19 = tpu.reciprocal %18 {approx = true} : vector<16x32xf32> -> vector<16x32xf32>
    %cst_5 = arith.constant 0.000000e+00 : f32
    %20 = vector.broadcast %cst_5 : f32 to vector<16x32xf32>
    %21 = arith.cmpf oge, %0, %20 : vector<16x32xf32>
    %22 = arith.mulf %10, %19 : vector<16x32xf32>
    %23 = arith.select %21, %19, %22 : vector<16x32xi1>, vector<16x32xf32>
    %24 = arith.mulf %23, %6 : vector<16x32xf32>
    %cst_6 = arith.constant 1.000000e+00 : f32
    %25 = vector.broadcast %cst_6 : f32 to vector<16x32xf32>
    %26 = arith.subf %25, %23 : vector<16x32xf32>
    %cst_7 = arith.constant 1.000000e+00 : f32
    %27 = vector.broadcast %cst_7 : f32 to vector<16x32xf32>
    %28 = arith.subf %27, %6 : vector<16x32xf32>
    %29 = arith.mulf %26, %28 : vector<16x32xf32>
    %30 = arith.addf %24, %29 : vector<16x32xf32>
    %cst_8 = arith.constant 1.000000e+00 : f32
    %31 = vector.broadcast %cst_8 : f32 to vector<16x32xf32>
    %32 = arith.subf %31, %30 : vector<16x32xf32>
    %33 = arith.mulf %32, %32 : vector<16x32xf32>
    %cst_9 = arith.constant 2.500000e-01 : f32
    %34 = vector.broadcast %cst_9 : f32 to vector<16x32xf32>
    %35 = arith.mulf %34, %6 : vector<16x32xf32>
    %cst_10 = arith.constant 1.000000e+00 : f32
    %36 = vector.broadcast %cst_10 : f32 to vector<16x32xf32>
    %37 = arith.subf %36, %6 : vector<16x32xf32>
    %cst_11 = arith.constant 7.500000e-01 : f32
    %38 = vector.broadcast %cst_11 : f32 to vector<16x32xf32>
    %39 = arith.mulf %38, %37 : vector<16x32xf32>
    %40 = arith.addf %35, %39 : vector<16x32xf32>
    %41 = arith.mulf %40, %16 : vector<16x32xf32>
    %42 = arith.mulf %41, %33 : vector<16x32xf32>
    %43 = tpu.iota {dimensions = array<i32: 0>} : vector<16x1xi32>
    %c16_i32 = arith.constant 16 : i32
    %44 = arith.muli %arg0, %c16_i32 : i32
    %45 = vector.broadcast %44 : i32 to vector<16x1xi32>
    %46 = arith.addi %43, %45 : vector<16x1xi32>
    %c16_i32_12 = arith.constant 16 : i32
    %47 = vector.broadcast %c16_i32_12 : i32 to vector<16x1xi32>
    %48 = arith.cmpi slt, %46, %47 : vector<16x1xi32>
    %cst_13 = arith.constant 0.000000e+00 : f32
    %49 = vector.shape_cast %48 : vector<16x1xi1> to vector<16x1xi1>
    %50 = vector.broadcast %49 : vector<16x1xi1> to vector<16x32xi1>
    %51 = vector.broadcast %cst_13 : f32 to vector<16x32xf32>
    %52 = arith.select %50, %42, %51 : vector<16x32xi1>, vector<16x32xf32>
    %c0_i32 = arith.constant 0 : i32
    %53 = arith.cmpi eq, %arg0, %c0_i32 : i32
    %54 = arith.extui %53 : i1 to i32
    %c0_i32_14 = arith.constant 0 : i32
    %55 = arith.cmpi ne, %54, %c0_i32_14 : i32
    scf.if %55 {
      %cst_30 = arith.constant 0.000000e+00 : f32
      %85 = vector.broadcast %cst_30 : f32 to vector<1x1xf32>
      %c0_31 = arith.constant 0 : index
      %c0_32 = arith.constant 0 : index
      %86 = vector.load %arg10[%c0_31, %c0_32] : memref<1x1xf32, #tpu.memory_space<vmem>>, vector<1x1xf32>
      tpu.vector_store %arg10[%c0_31, %c0_32], %85 {strides = array<i32>} : memref<1x1xf32, #tpu.memory_space<vmem>>, vector<1x1xf32>,
    } else {
    }
    %c0_15 = arith.constant 0 : index
    %c0_16 = arith.constant 0 : index
    %56 = vector.load %arg10[%c0_15, %c0_16] : memref<1x1xf32, #tpu.memory_space<vmem>>, vector<1x1xf32>
    %57 = vector.shape_cast %52 : vector<16x32xf32> to vector<1x16x32xf32>
    %cst_17 = arith.constant dense<0.000000e+00> : vector<1xf32>
    %58 = vector.multi_reduction <add>, %57, %cst_17 [1, 2] : vector<1x16x32xf32> to vector<1xf32>
    %59 = vector.shape_cast %58 : vector<1xf32> to vector<1x1x1xf32>
    %60 = vector.extract %59[0, 0, 0] : f32 from vector<1x1x1xf32>
    %61 = vector.broadcast %60 : f32 to vector<1x1xf32>
    %62 = arith.addf %56, %61 : vector<1x1xf32>
    %c0_18 = arith.constant 0 : index
    %c0_19 = arith.constant 0 : index
    %63 = vector.load %arg10[%c0_18, %c0_19] : memref<1x1xf32, #tpu.memory_space<vmem>>, vector<1x1xf32>
    tpu.vector_store %arg10[%c0_18, %c0_19], %62 {strides = array<i32>} : memref<1x1xf32, #tpu.memory_space<vmem>>, vector<1x1xf32>,
    %c31_i32 = arith.constant 31 : i32
    %64 = vector.broadcast %c31_i32 : i32 to vector<16x32xi32>
    %65 = arith.cmpi slt, %1, %64 : vector<16x32xi32>
    %cst_20 = arith.constant 0xFF800000 : f32
    %66 = vector.broadcast %cst_20 : f32 to vector<16x32xf32>
    %67 = arith.select %65, %0, %66 : vector<16x32xi1>, vector<16x32xf32>
    %cst_21 = arith.constant dense<0xFF800000> : vector<16xf32>
    %68 = vector.multi_reduction <maximumf>, %67, %cst_21 [1] : vector<16x32xf32> to vector<16xf32>
    %69 = vector.shape_cast %68 : vector<16xf32> to vector<16x1xf32>
    %c31_i32_22 = arith.constant 31 : i32
    %70 = vector.broadcast %c31_i32_22 : i32 to vector<16x32xi32>
    %71 = arith.cmpi eq, %1, %70 : vector<16x32xi32>
    %cst_23 = arith.constant 0.000000e+00 : f32
    %72 = vector.broadcast %cst_23 : f32 to vector<16x32xf32>
    %73 = arith.select %71, %0, %72 : vector<16x32xi1>, vector<16x32xf32>
    %cst_24 = arith.constant dense<0.000000e+00> : vector<16xf32>
    %74 = vector.multi_reduction <add>, %73, %cst_24 [1] : vector<16x32xf32> to vector<16xf32>
    %75 = vector.shape_cast %74 : vector<16xf32> to vector<16x1xf32>
    %76 = arith.cmpf oge, %69, %75 : vector<16x1xf32>
    %77 = arith.extui %76 : vector<16x1xi1> to vector<16x1xi32>
    %78 = arith.sitofp %77 : vector<16x1xi32> to vector<16x1xf32>
    %cst_25 = arith.constant 0.000000e+00 : f32
    %79 = vector.broadcast %cst_25 : f32 to vector<16x1xf32>
    %80 = arith.select %48, %78, %79 : vector<16x1xi1>, vector<16x1xf32>
    %c0_26 = arith.constant 0 : index
    %c0_27 = arith.constant 0 : index
    %81 = vector.load %arg9[%c0_26, %c0_27] : memref<16x1xf32, #tpu.memory_space<vmem>>, vector<16x1xf32>
    tpu.vector_store %arg9[%c0_26, %c0_27], %80 {strides = array<i32>} : memref<16x1xf32, #tpu.memory_space<vmem>>, vector<16x1xf32>,
    %c0_i32_28 = arith.constant 0 : i32
    %82 = arith.cmpi eq, %arg0, %c0_i32_28 : i32
    %83 = arith.extui %82 : i1 to i32
    %c0_i32_29 = arith.constant 0 : i32
    %84 = arith.cmpi ne, %83, %c0_i32_29 : i32
    scf.if %84 {
      %c0_30 = arith.constant 0 : index
      %c0_31 = arith.constant 0 : index
      %85 = vector.load %arg10[%c0_30, %c0_31] : memref<1x1xf32, #tpu.memory_space<vmem>>, vector<1x1xf32>
      %c0_32 = arith.constant 0 : index
      %86 = memref.load %arg1[%c0_32] : memref<1xf32, #tpu.memory_space<smem>>
      %87 = vector.broadcast %86 : f32 to vector<1x1xf32>
      %88 = arith.divf %85, %87 : vector<1x1xf32>
      %c0_33 = arith.constant 0 : index
      %c0_34 = arith.constant 0 : index
      %89 = vector.load %arg7[%c0_33, %c0_34] : memref<1x1xf32, #tpu.memory_space<vmem>>, vector<1x1xf32>
      tpu.vector_store %arg7[%c0_33, %c0_34], %88 {strides = array<i32>} : memref<1x1xf32, #tpu.memory_space<vmem>>, vector<1x1xf32>,
      %c0_35 = arith.constant 0 : index
      %c0_36 = arith.constant 0 : index
      %90 = vector.load %arg4[%c0_35, %c0_36] : memref<2x11xf32, #tpu.memory_space<vmem>>, vector<2x11xf32>
      %91 = tpu.iota {dimensions = array<i32: 1>} : vector<2x11xi32>
      %c0_37 = arith.constant 0 : index
      %c0_38 = arith.constant 0 : index
      %92 = vector.load %arg5[%c0_37, %c0_38] : memref<2x1xi32, #tpu.memory_space<vmem>>, vector<2x1xi32>
      %93 = vector.broadcast %92 : vector<2x1xi32> to vector<2x11xi32>
      %94 = arith.cmpi eq, %91, %93 : vector<2x11xi32>
      %95 = arith.extui %94 : vector<2x11xi1> to vector<2x11xi32>
      %96 = arith.sitofp %95 : vector<2x11xi32> to vector<2x11xf32>
      %97 = math.absf %90 : vector<2x11xf32>
      %cst_39 = arith.constant 0.000000e+00 : f32
      %98 = vector.broadcast %cst_39 : f32 to vector<2x11xf32>
      %99 = arith.subf %98, %97 : vector<2x11xf32>
      %100 = math.exp %99 : vector<2x11xf32>
      %cst_40 = arith.constant 0.000000e+00 : f32
      %101 = vector.broadcast %cst_40 : f32 to vector<2x11xf32>
      %102 = arith.maximumf %90, %101 : vector<2x11xf32>
      %103 = arith.mulf %90, %96 : vector<2x11xf32>
      %104 = arith.subf %102, %103 : vector<2x11xf32>
      %105 = math.log1p %100 : vector<2x11xf32>
      %106 = arith.addf %104, %105 : vector<2x11xf32>
      %c0_41 = arith.constant 0 : index
      %c0_42 = arith.constant 0 : index
      %107 = vector.load %arg6[%c0_41, %c0_42] : memref<1x11xf32, #tpu.memory_space<vmem>>, vector<1x11xf32>
      %cst_43 = arith.constant 1.000000e+00 : f32
      %108 = vector.broadcast %cst_43 : f32 to vector<1x11xf32>
      %109 = arith.subf %108, %107 : vector<1x11xf32>
      %110 = vector.broadcast %109 : vector<1x11xf32> to vector<2x11xf32>
      %111 = arith.mulf %106, %110 : vector<2x11xf32>
      %112 = arith.sitofp %92 : vector<2x1xi32> to vector<2x1xf32>
      %113 = arith.sitofp %91 : vector<2x11xi32> to vector<2x11xf32>
      %114 = vector.broadcast %112 : vector<2x1xf32> to vector<2x11xf32>
      %115 = arith.subf %114, %113 : vector<2x11xf32>
      %116 = arith.mulf %115, %115 : vector<2x11xf32>
      %cst_44 = arith.constant 0.000000e+00 : f32
      %117 = vector.broadcast %cst_44 : f32 to vector<2x11xf32>
      %118 = arith.subf %117, %116 : vector<2x11xf32>
      %cst_45 = arith.constant 1.250000e-01 : f32
      %119 = vector.broadcast %cst_45 : f32 to vector<2x11xf32>
      %120 = arith.mulf %118, %119 : vector<2x11xf32>
      %121 = math.exp %120 : vector<2x11xf32>
      %cst_46 = arith.constant 1.000000e+00 : f32
      %122 = vector.broadcast %cst_46 : f32 to vector<2x11xf32>
      %123 = arith.subf %122, %121 : vector<2x11xf32>
      %cst_47 = arith.constant 1.000000e+00 : f32
      %124 = vector.broadcast %cst_47 : f32 to vector<2x11xf32>
      %125 = arith.subf %124, %96 : vector<2x11xf32>
      %126 = arith.mulf %123, %125 : vector<2x11xf32>
      %127 = arith.addf %96, %126 : vector<2x11xf32>
      %128 = arith.mulf %111, %127 : vector<2x11xf32>
      %129 = vector.shape_cast %128 : vector<2x11xf32> to vector<1x2x11xf32>
      %cst_48 = arith.constant dense<0.000000e+00> : vector<1xf32>
      %130 = vector.multi_reduction <add>, %129, %cst_48 [1, 2] : vector<1x2x11xf32> to vector<1xf32>
      %131 = vector.shape_cast %130 : vector<1xf32> to vector<1x1x1xf32>
      %132 = vector.extract %131[0, 0, 0] : f32 from vector<1x1x1xf32>
      %cst_49 = arith.constant 2.200000e+01 : f32
      %133 = arith.divf %132, %cst_49 : f32
      %134 = vector.broadcast %133 : f32 to vector<1x1xf32>
      %c0_50 = arith.constant 0 : index
      %c0_51 = arith.constant 0 : index
      %135 = vector.load %arg8[%c0_50, %c0_51] : memref<1x1xf32, #tpu.memory_space<vmem>>, vector<1x1xf32>
      tpu.vector_store %arg8[%c0_50, %c0_51], %134 {strides = array<i32>} : memref<1x1xf32, #tpu.memory_space<vmem>>, vector<1x1xf32>,
    } else {
    }
    return
  }
  func.func @transform_0(%arg0: i32) -> i32 {
    %c0_i32 = arith.constant 0 : i32
    %c0_i32_0 = arith.constant 0 : i32
    return %c0_i32 : i32
  }
  func.func @transform_1(%arg0: i32) -> (i32, i32) {
    %c0_i32 = arith.constant 0 : i32
    %c0_i32_0 = arith.constant 0 : i32
    return %arg0, %c0_i32 : i32, i32
  }
  func.func @transform_2(%arg0: i32) -> (i32, i32) {
    %c0_i32 = arith.constant 0 : i32
    %c0_i32_0 = arith.constant 0 : i32
    return %arg0, %c0_i32 : i32, i32
  }
  func.func @transform_3(%arg0: i32) -> (i32, i32) {
    %c0_i32 = arith.constant 0 : i32
    %c0_i32_0 = arith.constant 0 : i32
    %c0_i32_1 = arith.constant 0 : i32
    return %c0_i32, %c0_i32_0 : i32, i32
  }
  func.func @transform_4(%arg0: i32) -> (i32, i32) {
    %c0_i32 = arith.constant 0 : i32
    %c0_i32_0 = arith.constant 0 : i32
    %c0_i32_1 = arith.constant 0 : i32
    return %c0_i32, %c0_i32_0 : i32, i32
  }
  func.func @transform_5(%arg0: i32) -> (i32, i32) {
    %c0_i32 = arith.constant 0 : i32
    %c0_i32_0 = arith.constant 0 : i32
    %c0_i32_1 = arith.constant 0 : i32
    return %c0_i32, %c0_i32_0 : i32, i32
  }
  func.func @transform_6(%arg0: i32) -> (i32, i32) {
    %c0_i32 = arith.constant 0 : i32
    %c0_i32_0 = arith.constant 0 : i32
    %c0_i32_1 = arith.constant 0 : i32
    return %c0_i32, %c0_i32_0 : i32, i32
  }
  func.func @transform_7(%arg0: i32) -> (i32, i32) {
    %c0_i32 = arith.constant 0 : i32
    %c0_i32_0 = arith.constant 0 : i32
    %c0_i32_1 = arith.constant 0 : i32
    return %c0_i32, %c0_i32_0 : i32, i32
  }
  func.func @transform_8(%arg0: i32) -> (i32, i32) {
    %c0_i32 = arith.constant 0 : i32
    %c0_i32_0 = arith.constant 0 : i32
    return %arg0, %c0_i32 : i32, i32
  }
}

</mosaic_0001>

<llo_original>
// kernel: tpu_custom_call.1
$region0: #{tpu_custom_call.1}
  #allocation0 [shape = 'u32[]', space=smem, size = 0x4, offset = 0x4, fixed_abs, tag = 'smem constant byte address 0x4 - core index']
  #allocation1 [shape = 'u32[144,128]{1,0:T(1,128)}', space=vmem, size = 0x12000, scoped, tag = 'internal scratch']
  #allocation2 [shape = 'f32[1,1]{1,0:T(1,128)}', space=vmem, size = 0x200, scoped, tag = 'scratch operand']
  #allocation3 [shape = 'f32[1]{0:T(128)S(6)}', space=smem, size = 0x200, scoped, tag = 'scoped memory for tpu_custom_call.1']
  %s0 = inlined_call_operand.<no memory space> [shape: f32[1], index: 0, kind: input, shape index: {}]
  %s1 = inlined_call_operand.vmem [shape: f32[16,32], index: 1, kind: input, shape index: {}]
  %s2 = inlined_call_operand.vmem [shape: s32[16,1], index: 2, kind: input, shape index: {}]
  %s3 = inlined_call_operand.vmem [shape: f32[2,11], index: 3, kind: input, shape index: {}]
  %s4 = inlined_call_operand.vmem [shape: s32[2,1], index: 4, kind: input, shape index: {}]
  %s5 = inlined_call_operand.vmem [shape: f32[1,11], index: 5, kind: input, shape index: {}]
  %s6 = inlined_call_operand.hbm [shape: f32[1,1], index: 6, kind: output, shape index: {0}]
  %s7 = inlined_call_operand.hbm [shape: f32[1,1], index: 7, kind: output, shape index: {1}]
  %s8 = inlined_call_operand.vmem [shape: f32[16,1], index: 8, kind: output, shape index: {2}]
  %9 = xla_tuple %s6, %s7, %s8
  %s10 = sld [smem:[#allocation0]]
  $region58: #{tpu_custom_call.1} parent=0
    _
  %s12 = ssub.s32 1, %s10
  %s13 = scalar_select 0, %s12, %s10
  %14 = sst [smem:[#allocation3]] %s0
  $region1: #{tpu_custom_call.1} parent=0
    #allocation4 [shape = 'u8[512]{0}', space=vmem, size = 0x400, scoped, tag = 'output window, operand 0, single buffered']
    #allocation5 [shape = 's32[1]{0}', space=sflag, size = 0x4, scoped, tag = 'scoped memory for tpu_custom_call.1']
    #allocation6 [shape = 'u8[512]{0}', space=vmem, size = 0x400, scoped, tag = 'output window, operand 1, single buffered']
    #allocation7 [shape = 's32[1]{0}', space=sflag, size = 0x4, scoped, tag = 'scoped memory for tpu_custom_call.1']
    %15 = vsyncpa [#allocation5], 0
    %16 = vsyncpa [#allocation7], 0
    // Predicated region
    $region2: #{tpu_custom_call.1} parent=1 // pred_check
      _
    $region3: #{tpu_custom_call.1} parent=1 // pred_check_branch
      %18 = sbr.rel (0) target = $region5
    $region4: #{tpu_custom_call.1} parent=1 // pred_region
      _
    $region5: #{tpu_custom_call.1} parent=1 // pred_fallthru
      _
    // Predicated region
    $region6: #{tpu_custom_call.1} parent=1 // pred_check
      _
    $region7: #{tpu_custom_call.1} parent=1 // pred_check_branch
      %20 = sbr.rel (0) target = $region9
    $region8: #{tpu_custom_call.1} parent=1 // pred_region
      _
    $region9: #{tpu_custom_call.1} parent=1 // pred_fallthru
      _
    // Predicated region
    $region10: #{tpu_custom_call.1} parent=1 // pred_check
      _
    $region11: #{tpu_custom_call.1} parent=1 // pred_check_branch
      %22 = sbr.rel (0) target = $region13
    $region12: #{tpu_custom_call.1} parent=1 // pred_region
      _
    $region13: #{tpu_custom_call.1} parent=1 // pred_fallthru
      _
    // Predicated region
    $region14: #{tpu_custom_call.1} parent=1 // pred_check
      _
    $region15: #{tpu_custom_call.1} parent=1 // pred_check_branch
      %24 = sbr.rel (0) target = $region17
    $region16: #{tpu_custom_call.1} parent=1 // pred_region
      _
    $region17: #{tpu_custom_call.1} parent=1 // pred_fallthru
      _
    // Predicated region
    $region18: #{tpu_custom_call.1} parent=1 // pred_check
      _
    $region19: #{tpu_custom_call.1} parent=1 // pred_check_branch
      %26 = sbr.rel (0) target = $region21
    $region20: #{tpu_custom_call.1} parent=1 // pred_region
      _
    $region21: #{tpu_custom_call.1} parent=1 // pred_fallthru
      _
    // Predicated region
    $region22: #{tpu_custom_call.1} parent=1 // pred_check
      _
    $region23: #{tpu_custom_call.1} parent=1 // pred_check_branch
      %28 = sbr.rel (0) target = $region25
    $region24: #{tpu_custom_call.1} parent=1 // pred_region
      _
    $region25: #{tpu_custom_call.1} parent=1 // pred_fallthru
      _
    %v29 = vld [vmem:[%s1] sm:$0xff]
    %v30 = vld [vmem:[%s1 + $0x8] sm:$0xff]
    %v31 = vlaneseq
    %v32 = vand.u32 %v31, 127
    %v33 = vld [vmem:[%s2] sm:$0xff]
    %v34 = vld [vmem:[%s2 + $0x8] sm:$0xff]
    %35 = vset.pattern.permute.xlu0 0
    %36 = vperm.xlu0 %35, %v33
    %v37 = vpop.permute.xlu0 %36
    %38 = vset.pattern.permute.xlu0 0
    %39 = vperm.xlu0 %38, %v34
    %v40 = vpop.permute.xlu0 %39
    %vm41 = vcmp.eq.s32.totalorder %v32, %v37
    %vm42 = vcmp.eq.s32.totalorder %v32, %v40
    %v43 = vsel %vm41, 1, 0
    %v44 = vsel %vm42, 1, 0
    %v45 = vcvt.s32.f32 %v43
    %v46 = vcvt.s32.f32 %v44
    %v47 = vand.u32 2147483647, %v29
    %v48 = vand.u32 2147483647, %v30
    %v49 = vsub.f32 0.0, %v47
    %v50 = vsub.f32 0.0, %v48
    %v51 = vmul.f32 %v49, 1.442695
    %v52 = vpow.pop %v51
    %v53 = vmul.f32 %v50, 1.442695
    %v54 = vpow.pop %v53
    %v55 = vmax.f32 %v29, 0.0
    %v56 = vmax.f32 %v30, 0.0
    %v57 = vmul.f32 %v29, %v45
    %v58 = vmul.f32 %v30, %v46
    %v59 = vsub.f32 %v55, %v57
    %v60 = vsub.f32 %v56, %v58
    %v61 = vadd.f32 %v52, 1.0
    %v62 = vlog2.pop %v61
    %v63 = vmul.f32 %v62, 0.6931472
    %v64 = vmul.f32 -0.5, %v52
    %v65 = vadd.f32 %v64, 1.0
    %v66 = vmul.f32 %v65, %v52
    %v67 = vand.u32 2147483647, %v52
    %vm68 = vcmp.lt.f32.partialorder %v67, 0.0004427343
    %v69 = vsel %vm68, %v66, %v63
    %v70 = vadd.f32 %v54, 1.0
    %v71 = vlog2.pop %v70
    %v72 = vmul.f32 %v71, 0.6931472
    %v73 = vmul.f32 -0.5, %v54
    %v74 = vadd.f32 %v73, 1.0
    %v75 = vmul.f32 %v74, %v54
    %v76 = vand.u32 2147483647, %v54
    %vm77 = vcmp.lt.f32.partialorder %v76, 0.0004427343
    %v78 = vsel %vm77, %v75, %v72
    %v79 = vadd.f32 %v59, %v69
    %v80 = vadd.f32 %v60, %v78
    %v81 = vadd.f32 %v52, 1.0
    %v82 = vadd.f32 %v54, 1.0
    %v83 = vrcp.pop %v81
    %v84 = vrcp.pop %v82
    %vm85 = vcmp.ge.f32.partialorder %v29, 0.0
    %vm86 = vcmp.ge.f32.partialorder %v30, 0.0
    %v87 = vmul.f32 %v52, %v83
    %v88 = vmul.f32 %v54, %v84
    %v89 = vsel %vm85, %v83, %v87
    %v90 = vsel %vm86, %v84, %v88
    %v91 = vmul.f32 %v89, %v45
    %v92 = vmul.f32 %v90, %v46
    %v93 = vsub.f32 1.0, %v89
    %v94 = vsub.f32 1.0, %v90
    %v95 = vsub.f32 1.0, %v45
    %v96 = vsub.f32 1.0, %v46
    %v97 = vmul.f32 %v93, %v95
    %v98 = vmul.f32 %v94, %v96
    %v99 = vadd.f32 %v91, %v97
    %v100 = vadd.f32 %v92, %v98
    %v101 = vsub.f32 1.0, %v99
    %v102 = vsub.f32 1.0, %v100
    %v103 = vmul.f32 %v101, %v101
    %v104 = vmul.f32 %v102, %v102
    %v105 = vmul.f32 %v45, 0.25
    %v106 = vmul.f32 %v46, 0.25
    %v107 = vmul.f32 %v95, 0.75
    %v108 = vmul.f32 %v96, 0.75
    %v109 = vadd.f32 %v105, %v107
    %v110 = vadd.f32 %v106, %v108
    %v111 = vmul.f32 %v109, %v79
    %v112 = vmul.f32 %v110, %v80
    %v113 = vmul.f32 %v111, %v103
    %v114 = vmul.f32 %v112, %v104
    %v115 = vlaneseq
    %v116 = vshrl.u32 %v115, 7
    %v117 = vadd.s32 %v116, 8
    %s118 = smul.u32 0, 16
    %v119 = vstv %s118
    %v120 = vadd.s32 %v116, %v119
    %v121 = vadd.s32 %v117, %v119
    %vm122 = vcmp.lt.s32.totalorder %v120, 16
    %vm123 = vcmp.lt.s32.totalorder %v121, 16
    %v124 = vsel %vm122, 1, 0
    %v125 = vsel %vm123, 1, 0
    %vm126 = vcmp.eq.s32.totalorder %v124, 1
    %vm127 = vcmp.eq.s32.totalorder %v125, 1
    %v128 = vsel %vm126, %v113, 0.0
    %v129 = vsel %vm127, %v114, 0.0
    %p130 = scmp.eq.s32.totalorder 0, 0
    // Predicated region
    $region26: #{tpu_custom_call.1} parent=1 // pred_check
      %p131 = pneg %p130
    $region27: #{tpu_custom_call.1} parent=1 // pred_check_branch
      %133 = sbr.rel (%p131) target = $region29
    $region28: #{tpu_custom_call.1} parent=1 // pred_region
      %vm134 = vcmask 0
      %135 = vst.msk [vmem:[#allocation2] sm:$0x1] %vm134, 0.0
    $region29: #{tpu_custom_call.1} parent=1 // pred_fallthru
      _
    %v136 = vld [vmem:[#allocation2] sm:$0x1]
    %vm137 = vcmask 261120
    %v138 = vsel %vm137, %v128, 0.0
    %v139 = vsel %vm137, %v129, 0.0
    %v140 = vadd.f32 %v138, %v139
    %141 = vadd.xlane.f32.xlu0 %v140
    %v142 = vpop.xlane.xlu0 %141
    %v143 = vrot.slane %v142, 4
    %v144 = vadd.f32 %v142, %v143
    %v145 = vrot.slane %v144, 2
    %v146 = vadd.f32 %v144, %v145
    %v147 = vrot.slane %v146, 1
    %v148 = vadd.f32 %v146, %v147
    %s149 = vtos %v148
    %v150 = vstv %s149
    %v151 = vadd.f32 %v136, %v150
    %vm152 = vcmask 0
    %153 = vst.msk [vmem:[#allocation2] sm:$0x1] %vm152, %v151
    %vm154 = vcmp.lt.s32.totalorder %v32, 31
    %v155 = vsel %vm154, %v29, -inf
    %v156 = vsel %vm154, %v30, -inf
    %v157 = vsel %vm137, %v155, -inf
    %158 = vmax.xlane.f32.xlu0 %v157
    %v159 = vpop.xlane.xlu0 %158
    %v160 = vsel %vm137, %v156, -inf
    %161 = vmax.xlane.f32.xlu0 %v160
    %v162 = vpop.xlane.xlu0 %161
    %vm163 = vcmp.eq.s32.totalorder %v32, 31
    %v164 = vsel %vm163, %v29, 0.0
    %v165 = vsel %vm163, %v30, 0.0
    %v166 = vsel %vm137, %v164, 0.0
    %167 = vadd.xlane.f32.xlu0 %v166
    %v168 = vpop.xlane.xlu0 %167
    %v169 = vsel %vm137, %v165, 0.0
    %170 = vadd.xlane.f32.xlu0 %v169
    %v171 = vpop.xlane.xlu0 %170
    %vm172 = vcmp.ge.f32.partialorder %v159, %v168
    %vm173 = vcmp.ge.f32.partialorder %v162, %v171
    %v174 = vsel %vm172, 1, 0
    %v175 = vsel %vm173, 1, 0
    %v176 = vcvt.s32.f32 %v174
    %v177 = vcvt.s32.f32 %v175
    %v178 = vsel %vm122, %v176, 0.0
    %v179 = vsel %vm123, %v177, 0.0
    %vm180 = vcmask 7168
    %181 = vst.msk [vmem:[%s8] sm:$0xff] %vm180, %v178
    %182 = vst.msk [vmem:[%s8 + $0x8] sm:$0xff] %vm180, %v179
    // Predicated region
    $region30: #{tpu_custom_call.1} parent=1 // pred_check
      %p183 = pneg %p130
    $region31: #{tpu_custom_call.1} parent=1 // pred_check_branch
      %185 = sbr.rel (%p183) target = $region33
    $region32: #{tpu_custom_call.1} parent=1 // pred_region
      %v186 = vld [vmem:[#allocation2] sm:$0x1]
      %s187 = sld [smem:[#allocation3]]
      %v188 = vstv %s187
      %v189 = vrcp.pop %v188
      %v190 = vmul.f32 %v186, %v189
      %191 = vst.msk [vmem:[#allocation4] sm:$0x1] %vm152, %v190
      %v192 = vld [vmem:[%s3] sm:$0x3]
      %v193 = vld [vmem:[%s4] sm:$0x3]
      %194 = vset.pattern.permute.xlu0 0
      %195 = vperm.xlu0 %194, %v193
      %v196 = vpop.permute.xlu0 %195
      %vm197 = vcmp.eq.s32.totalorder %v32, %v196
      %v198 = vsel %vm197, 1, 0
      %v199 = vcvt.s32.f32 %v198
      %v200 = vand.u32 2147483647, %v192
      %v201 = vsub.f32 0.0, %v200
      %v202 = vmul.f32 %v201, 1.442695
      %v203 = vpow.pop %v202
      %v204 = vmax.f32 %v192, 0.0
      %v205 = vmul.f32 %v192, %v199
      %v206 = vsub.f32 %v204, %v205
      %v207 = vadd.f32 %v203, 1.0
      %v208 = vlog2.pop %v207
      %v209 = vmul.f32 %v208, 0.6931472
      %v210 = vmul.f32 -0.5, %v203
      %v211 = vadd.f32 %v210, 1.0
      %v212 = vmul.f32 %v211, %v203
      %v213 = vand.u32 2147483647, %v203
      %vm214 = vcmp.lt.f32.partialorder %v213, 0.0004427343
      %v215 = vsel %vm214, %v212, %v209
      %v216 = vadd.f32 %v206, %v215
      %v217 = vld [vmem:[%s5] sm:$0x1]
      %v218 = vsub.f32 1.0, %v217
      %v220 = vlaneseq
      %v221 = vshrl.u32 %v220, 7
      %v222 = vsub.s32 0, %v221
      %v223 = vrot.slane %v218, %v222
      %v225 = vmul.f32 %v216, %v223
      %v226 = vcvt.s32.f32 %v193
      %v227 = vcvt.s32.f32 %v32
      %229 = vset.pattern.permute.xlu0 0
      %230 = vperm.xlu0 %229, %v226
      %v231 = vpop.permute.xlu0 %230
      %v233 = vsub.f32 %v231, %v227
      %v234 = vmul.f32 %v233, %v233
      %v235 = vsub.f32 0.0, %v234
      %v236 = vmul.f32 %v235, 0.125
      %v237 = vmul.f32 %v236, 1.442695
      %v238 = vpow.pop %v237
      %v239 = vsub.f32 1.0, %v238
      %v240 = vsub.f32 1.0, %v199
      %v241 = vmul.f32 %v239, %v240
      %v242 = vadd.f32 %v199, %v241
      %v243 = vmul.f32 %v225, %v242
      %vm244 = vcmask 82944
      %v245 = vsel %vm244, %v243, 0.0
      %246 = vadd.xlane.f32.xlu0 %v245
      %v247 = vpop.xlane.xlu0 %246
      %v248 = vrot.slane %v247, 4
      %v249 = vadd.f32 %v247, %v248
      %v250 = vrot.slane %v249, 2
      %v251 = vadd.f32 %v249, %v250
      %v252 = vrot.slane %v251, 1
      %v253 = vadd.f32 %v251, %v252
      %s254 = vtos %v253
      %v255 = vrcp.pop 22.0
      %s256 = vtos %v255
      %s257 = smul.f32 %s254, %s256
      %v258 = vstv %s257
      %259 = vst.msk [vmem:[#allocation6] sm:$0x1] %vm152, %v258
    $region33: #{tpu_custom_call.1} parent=1 // pred_fallthru
      _
    // Predicated region
    $region34: #{tpu_custom_call.1} parent=1 // pred_check
      _
    $region35: #{tpu_custom_call.1} parent=1 // pred_check_branch
      %261 = sbr.rel (0) target = $region37
    $region36: #{tpu_custom_call.1} parent=1 // pred_region
      %s263 = ssub.s32 16, 16
      %264 = vsyncadd [#allocation5], %s263
      %s266 = sshll.u32 [#allocation4], 4
      %s267 = int_to_ptr.vmem [resolvable:$true] %s266
      %269 = dma.vmem_to_hbm [thread:$0]  %s267, 16, %s6, [#allocation5]
    $region37: #{tpu_custom_call.1} parent=1 // pred_fallthru
      _
    // Predicated region
    $region38: #{tpu_custom_call.1} parent=1 // pred_check
      _
    $region39: #{tpu_custom_call.1} parent=1 // pred_check_branch
      %271 = sbr.rel (0) target = $region41
    $region40: #{tpu_custom_call.1} parent=1 // pred_region
      %s273 = ssub.s32 16, 16
      %274 = vsyncadd [#allocation7], %s273
      %s276 = sshll.u32 [#allocation6], 4
      %s277 = int_to_ptr.vmem [resolvable:$true] %s276
      %279 = dma.vmem_to_hbm [thread:$0]  %s277, 16, %s7, [#allocation7]
    $region41: #{tpu_custom_call.1} parent=1 // pred_fallthru
      _
    // Predicated region
    $region42: #{tpu_custom_call.1} parent=1 // pred_check
      _
    $region43: #{tpu_custom_call.1} parent=1 // pred_check_branch
      %281 = sbr.rel (0) target = $region45
    $region44: #{tpu_custom_call.1} parent=1 // pred_region
      _
    $region45: #{tpu_custom_call.1} parent=1 // pred_fallthru
      _
    // Predicated region
    $region46: #{tpu_custom_call.1} parent=1 // pred_check
      _
    $region47: #{tpu_custom_call.1} parent=1 // pred_check_branch
      %283 = sbr.rel (0) target = $region49
    $region48: #{tpu_custom_call.1} parent=1 // pred_region
      %284 = dma.done [#allocation5], 16
    $region49: #{tpu_custom_call.1} parent=1 // pred_fallthru
      _
    // Predicated region
    $region50: #{tpu_custom_call.1} parent=1 // pred_check
      _
    $region51: #{tpu_custom_call.1} parent=1 // pred_check_branch
      %286 = sbr.rel (0) target = $region53
    $region52: #{tpu_custom_call.1} parent=1 // pred_region
      %287 = dma.done [#allocation7], 16
    $region53: #{tpu_custom_call.1} parent=1 // pred_fallthru
      _
    // Predicated region
    $region54: #{tpu_custom_call.1} parent=1 // pred_check
      _
    $region55: #{tpu_custom_call.1} parent=1 // pred_check_branch
      %289 = sbr.rel (0) target = $region57
    $region56: #{tpu_custom_call.1} parent=1 // pred_region
      _
    $region57: #{tpu_custom_call.1} parent=1 // pred_fallthru
      _
    %290 = vsyncpa [#allocation5], 1
    %291 = vsyncpa [#allocation7], 1

</llo_original>
